<compile_context>
chip_gen: v7x
topology: tpu7x:2x2x1
jax: 0.10.0
libtpu: 0.0.40
codegen_flags: <defaults>
</compile_context>

<pallas_src>
import functools

import jax
import jax.numpy as jnp
from jax import lax
from jax.experimental import pallas as pl
from jax.experimental.pallas import tpu as pltpu


def _round_up(v, m):
    return ((v + m - 1) // m) * m


def _vmem_capacity_bytes():
    try:
        return int(pltpu.get_tpu_info().vmem_capacity_bytes)
    except Exception:
        return 64 << 20  # conservative (v7x-sized) fallback


def _prenorm_linear_kernel(x_ref, w_ref, b_ref, gamma_ref, beta_ref, o_ref, xn_ref,
                           *, eps, m_total, tm, mask_tail, n_tiles):
    """Fused  LayerNorm(x) @ W + b  on one (TM, H) x (H, TN) tile pair.

    x_ref     : VMEM (TM, H)   streamed token tile (any float dtype)
    w_ref     : VMEM (H, TN)   fn's weight tile (bf16 for the MXU; resident if TN == H)
    b_ref     : VMEM (1, TN)   fn's bias (f32)
    gamma_ref : VMEM (1, H)    LayerNorm scale (f32, resident)
    beta_ref  : VMEM (1, H)    LayerNorm shift (f32, resident)
    o_ref     : VMEM (TM, TN)  output tile
    xn_ref    : VMEM (TM, H)   scratch: normalized activations in w's dtype
    """

    def _layernorm():
        # --- LayerNorm over the lane (H) axis, in f32 ------------------------
        x = x_ref[...].astype(jnp.float32)
        if mask_tail:
            # Tail tile: rows beyond M hold unspecified data; zero them so the
            # LayerNorm / matmul stay finite (their output rows are dropped by
            # the bounds-limited output DMA anyway).
            row = (pl.program_id(0) * tm
                   + lax.broadcasted_iota(jnp.int32, (tm, 1), 0))
            x = jnp.where(row < m_total, x, 0.0)
        mean = jnp.mean(x, axis=-1, keepdims=True)
        xc = x - mean
        var = jnp.mean(xc * xc, axis=-1, keepdims=True)
        inv = lax.rsqrt(var + eps)                         # EUP rsqrt
        xn = xc * inv * gamma_ref[...] + beta_ref[...]
        xn_ref[...] = xn.astype(xn_ref.dtype)              # cast once for the MXU

    if n_tiles == 1:
        _layernorm()
    else:
        # N is the inner ('arbitrary') grid axis: normalize once per M tile.
        pl.when(pl.program_id(1) == 0)(_layernorm)

    # --- fn = Linear: MXU matmul with f32 accumulation ------------------------
    y = jnp.dot(xn_ref[...], w_ref[...], preferred_element_type=jnp.float32)

    # --- f32 epilogue: bias add, then cast once --------------------------------
    o_ref[...] = (y + b_ref[...]).astype(o_ref.dtype)


def prenorm_linear(x, w, b, gamma, beta, *, eps=1e-5, tm=512,
                   mxu_dtype=jnp.bfloat16):
    """PreNorm(LayerNorm, H, Linear(H, H))(x)  ==  LayerNorm(x) @ W + b.

    x : [B, S, H]   w : [H, H] (in, out)   b : [H]   gamma, beta : [H]

    `mxu_dtype` (default bf16) is the matmul-operand dtype: W is cast in the
    wrapper and the normalized activations are cast in-kernel.  LayerNorm,
    bias add and accumulation are always f32.  Pass `mxu_dtype=None` to keep
    W's own dtype (f32 matmul is emulated on the MXU and much slower).
    Streaming dtype of x is whatever the caller provides (bf16 x halves HBM
    traffic); the output dtype follows x.
    """
    B, S, H = x.shape
    M = B * S
    out_dtype = x.dtype

    w_mx = w if mxu_dtype is None else w.astype(mxu_dtype)
    w_itemsize = jnp.dtype(w_mx.dtype).itemsize

    cap = _vmem_capacity_bytes()
    cap_limit = (cap * 7) // 8          # scoped-VMEM ceiling we are willing to request

    # --- N (output-column) tiling only if the resident W would not fit --------
    resident_budget = max(cap // 2, cap - (24 << 20))
    if H * H * w_itemsize > resident_budget and H % 256 == 0:
        tn = 512 if H % 512 == 0 else 256
    else:
        tn = H
        # TODO(synk): if W still does not fit (huge H not a multiple of 256),
        # add a K-axis grid with an f32 accumulator + pl.when finalize.
    n_tiles = H // tn
    resident_w = (n_tiles == 1)

    def _vmem_estimate(tm_, tn_):
        x_it = x.dtype.itemsize
        o_it = jnp.dtype(out_dtype).itemsize
        w_bufs = 1 if resident_w else 2          # single-buffered when resident
        return ((w_bufs * H * tn_ * w_itemsize)  # W
                + 2 * tm_ * H * x_it             # x tile (double-buffered)
                + 2 * tm_ * tn_ * o_it           # out tile (double-buffered)
                + tm_ * H * w_itemsize           # xn scratch
                + 4 * tm_ * H * 4                # kernel-internal f32 temporaries
                + 6 * H * 4                      # b / gamma / beta
                + (4 << 20))                     # headroom

    # --- TM selection: multiple of 8, >= 2 grid steps, fits the VMEM budget ---
    if M <= 8:
        tm_eff = M                               # full-extent block (always legal)
    else:
        tm_eff = max(8, (min(tm, _round_up(M, 8)) // 8) * 8)
        if pl.cdiv(M, tm_eff) < 2:               # keep both TCs busy on v7x
            tm_eff = max(8, _round_up(pl.cdiv(M, 2), 8))
        while tm_eff > 8 and _vmem_estimate(tm_eff, tn) > cap_limit:
            tm_eff = max(8, ((tm_eff // 2) // 8) * 8)

    m_tiles = pl.cdiv(M, tm_eff)
    mask_tail = (M % tm_eff) != 0

    vmem_limit = int(min(cap_limit, max(_vmem_estimate(tm_eff, tn), 32 << 20)))

    # --- operand prep (no padding: partial tail block is masked in-kernel) ----
    x2 = x.reshape(M, H)
    b2 = b.astype(jnp.float32).reshape(1, H)
    gamma2 = gamma.astype(jnp.float32).reshape(1, H)
    beta2 = beta.astype(jnp.float32).reshape(1, H)

    def _spec(shape, index_map, *, single_buffer=False):
        if single_buffer:
            return pl.BlockSpec(shape, index_map, pipeline_mode=pl.Buffered(1))
        return pl.BlockSpec(shape, index_map)

    kernel = functools.partial(
        _prenorm_linear_kernel,
        eps=eps, m_total=M, tm=tm_eff, mask_tail=mask_tail, n_tiles=n_tiles)

    out2 = pl.pallas_call(
        kernel,
        out_shape=jax.ShapeDtypeStruct((M, H), out_dtype),
        grid=(m_tiles, n_tiles),
        in_specs=[
            pl.BlockSpec((tm_eff, H), lambda i, n: (i, 0)),                    # x (streamed)
            _spec((H, tn), lambda i, n: (0, n), single_buffer=resident_w),     # W
            _spec((1, tn), lambda i, n: (0, n), single_buffer=resident_w),     # b
            _spec((1, H), lambda i, n: (0, 0), single_buffer=True),            # gamma
            _spec((1, H), lambda i, n: (0, 0), single_buffer=True),            # beta
        ],
        out_specs=pl.BlockSpec((tm_eff, tn), lambda i, n: (i, n)),
        scratch_shapes=[pltpu.VMEM((tm_eff, H), w_mx.dtype)],                  # xn cache
        compiler_params=pltpu.CompilerParams(
            dimension_semantics=("parallel", "arbitrary"),
            vmem_limit_bytes=vmem_limit,
        ),
    )(x2, w_mx, b2, gamma2, beta2)

    return out2.reshape(B, S, H)


def prenorm_linear_ref(x, w, b, gamma, beta, eps=1e-5, mxu_dtype=None):
    """Pure-JAX reference for  Linear(LayerNorm(x)).

    With mxu_dtype set, the matmul operands are cast the same way the kernel
    casts them (f32 LayerNorm, f32 accumulation) for a tight comparison.
    """
    xf = x.astype(jnp.float32)
    mean = jnp.mean(xf, axis=-1, keepdims=True)
    var = jnp.mean((xf - mean) ** 2, axis=-1, keepdims=True)
    xn = ((xf - mean) / jnp.sqrt(var + eps) * gamma.astype(jnp.float32)
          + beta.astype(jnp.float32))
    wf = w
    if mxu_dtype is not None:
        xn = xn.astype(mxu_dtype)
        wf = w.astype(mxu_dtype)
    y = jnp.einsum("bsh,hk->bsk", xn, wf,
                   preferred_element_type=jnp.float32) + b.astype(jnp.float32)
    return y.astype(x.dtype)


if __name__ == "__main__":
    key = jax.random.PRNGKey(0)
    k_x, k_w, k_b, k_g, k_be, k_x2 = jax.random.split(key, 6)

    B, S, H = 2, 8, 32
    x = jax.random.normal(k_x, (B, S, H), dtype=jnp.float32)

    # Deterministic synthetic parameters (per module __init__ shapes):
    #   norm = LayerNorm(H): gamma [H] (~1), beta [H] (~0)
    #   fn   = Linear(H, H): weight [H, H], bias [H]
    w = jax.random.normal(k_w, (H, H), dtype=jnp.float32) / jnp.sqrt(H)
    b = jax.random.normal(k_b, (H,), dtype=jnp.float32) * 0.1
    gamma = 1.0 + 0.05 * jax.random.normal(k_g, (H,), dtype=jnp.float32)
    beta = 0.05 * jax.random.normal(k_be, (H,), dtype=jnp.float32)

    # 1) Spec shape (M = 16): default bf16 MXU path, >= 2 grid steps along M.
    y = jax.block_until_ready(prenorm_linear(x, w, b, gamma, beta))
    y_ref_bf16 = prenorm_linear_ref(x, w, b, gamma, beta, mxu_dtype=jnp.bfloat16)
    y_ref_f32 = prenorm_linear_ref(x, w, b, gamma, beta)
    assert jnp.allclose(y, y_ref_bf16, atol=5e-3, rtol=5e-3), \
        "mismatch vs matched-dtype reference"
    assert jnp.allclose(y, y_ref_f32, atol=3e-2, rtol=3e-2), \
        "mismatch vs f32 module-semantics reference"

    # 2) Masked-tail streaming path: M = 20 is not a multiple of TM = 8
    #    (no jnp.pad / slice copies; tail rows masked in-kernel).
    x_big = jax.random.normal(k_x2, (1, 20, H), dtype=jnp.float32)
    y_big = jax.block_until_ready(prenorm_linear(x_big, w, b, gamma, beta, tm=8))
    y_big_ref = prenorm_linear_ref(x_big, w, b, gamma, beta, mxu_dtype=jnp.bfloat16)
    assert jnp.allclose(y_big, y_big_ref, atol=5e-3, rtol=5e-3), \
        "mismatch vs reference (masked tail)"

    print("KERNEL_OK")
</pallas_src>

<mosaic_0001>
module attributes {stable_mosaic.version = 11 : i64} {
  func.func @_prenorm_linear_kernel(%arg0: i32, %arg1: i32, %arg2: memref<8x32xf32, #tpu.memory_space<vmem>>, %arg3: memref<32x32xbf16, #tpu.memory_space<vmem>>, %arg4: memref<1x32xf32, #tpu.memory_space<vmem>>, %arg5: memref<1x32xf32, #tpu.memory_space<vmem>>, %arg6: memref<1x32xf32, #tpu.memory_space<vmem>>, %arg7: memref<8x32xf32, #tpu.memory_space<vmem>>, %arg8: memref<8x32xbf16, #tpu.memory_space<vmem>>) attributes {dimension_semantics = [#tpu.dimension_semantics<parallel>, #tpu.dimension_semantics<arbitrary>], iteration_bounds = array<i64: 2, 1>, scalar_prefetch = 0 : i64, scratch_operands = 1 : i64, tpu.core_type = #tpu.core_type<tc>, window_params = [{transform_indices = @transform_0, window_bounds = array<i64: 8, 32>}, {pipeline_mode = #tpu.pipeline_mode<synchronous>, transform_indices = @transform_1, window_bounds = array<i64: 32, 32>}, {pipeline_mode = #tpu.pipeline_mode<synchronous>, transform_indices = @transform_2, window_bounds = array<i64: 1, 32>}, {pipeline_mode = #tpu.pipeline_mode<synchronous>, transform_indices = @transform_3, window_bounds = array<i64: 1, 32>}, {pipeline_mode = #tpu.pipeline_mode<synchronous>, transform_indices = @transform_4, window_bounds = array<i64: 1, 32>}, {transform_indices = @transform_5, window_bounds = array<i64: 8, 32>}]} {
    %c0 = arith.constant 0 : index
    %c0_0 = arith.constant 0 : index
    %0 = vector.load %arg2[%c0, %c0_0] : memref<8x32xf32, #tpu.memory_space<vmem>>, vector<8x32xf32>
    %cst = arith.constant dense<0.000000e+00> : vector<8xf32>
    %1 = vector.multi_reduction <add>, %0, %cst [1] : vector<8x32xf32> to vector<8xf32>
    %2 = vector.shape_cast %1 : vector<8xf32> to vector<8x1xf32>
    %cst_1 = arith.constant 3.200000e+01 : f32
    %3 = vector.broadcast %cst_1 : f32 to vector<8x1xf32>
    %4 = arith.divf %2, %3 : vector<8x1xf32>
    %5 = vector.broadcast %4 : vector<8x1xf32> to vector<8x32xf32>
    %6 = arith.subf %0, %5 : vector<8x32xf32>
    %7 = arith.mulf %6, %6 : vector<8x32xf32>
    %cst_2 = arith.constant dense<0.000000e+00> : vector<8xf32>
    %8 = vector.multi_reduction <add>, %7, %cst_2 [1] : vector<8x32xf32> to vector<8xf32>
    %9 = vector.shape_cast %8 : vector<8xf32> to vector<8x1xf32>
    %cst_3 = arith.constant 3.200000e+01 : f32
    %10 = vector.broadcast %cst_3 : f32 to vector<8x1xf32>
    %11 = arith.divf %9, %10 : vector<8x1xf32>
    %cst_4 = arith.constant 9.99999974E-6 : f32
    %12 = vector.broadcast %cst_4 : f32 to vector<8x1xf32>
    %13 = arith.addf %11, %12 : vector<8x1xf32>
    %14 = math.rsqrt %13 : vector<8x1xf32>
    %15 = vector.broadcast %14 : vector<8x1xf32> to vector<8x32xf32>
    %16 = arith.mulf %6, %15 : vector<8x32xf32>
    %c0_5 = arith.constant 0 : index
    %c0_6 = arith.constant 0 : index
    %17 = vector.load %arg5[%c0_5, %c0_6] : memref<1x32xf32, #tpu.memory_space<vmem>>, vector<1x32xf32>
    %18 = vector.broadcast %17 : vector<1x32xf32> to vector<8x32xf32>
    %19 = arith.mulf %16, %18 : vector<8x32xf32>
    %c0_7 = arith.constant 0 : index
    %c0_8 = arith.constant 0 : index
    %20 = vector.load %arg6[%c0_7, %c0_8] : memref<1x32xf32, #tpu.memory_space<vmem>>, vector<1x32xf32>
    %21 = vector.broadcast %20 : vector<1x32xf32> to vector<8x32xf32>
    %22 = arith.addf %19, %21 : vector<8x32xf32>
    %23 = arith.truncf %22 : vector<8x32xf32> to vector<8x32xbf16>
    %c0_9 = arith.constant 0 : index
    %c0_10 = arith.constant 0 : index
    %24 = vector.load %arg8[%c0_9, %c0_10] : memref<8x32xbf16, #tpu.memory_space<vmem>>, vector<8x32xbf16>
    tpu.vector_store %arg8[%c0_9, %c0_10], %23 {strides = array<i32>} : memref<8x32xbf16, #tpu.memory_space<vmem>>, vector<8x32xbf16>,
    %c0_11 = arith.constant 0 : index
    %c0_12 = arith.constant 0 : index
    %25 = vector.load %arg8[%c0_11, %c0_12] : memref<8x32xbf16, #tpu.memory_space<vmem>>, vector<8x32xbf16>
    %c0_13 = arith.constant 0 : index
    %c0_14 = arith.constant 0 : index
    %26 = vector.load %arg3[%c0_13, %c0_14] : memref<32x32xbf16, #tpu.memory_space<vmem>>, vector<32x32xbf16>
    %cst_15 = arith.constant dense<0.000000e+00> : vector<8x32xf32>
    %27 = tpu.matmul %25, %26, %cst_15 {dimension_numbers = #tpu.dot_dimension_numbers<[1], [0], [0], [1], [0, 0, 1, 1], [], []>} : vector<8x32xbf16>, vector<32x32xbf16>, vector<8x32xf32> -> vector<8x32xf32>
    %c0_16 = arith.constant 0 : index
    %c0_17 = arith.constant 0 : index
    %28 = vector.load %arg4[%c0_16, %c0_17] : memref<1x32xf32, #tpu.memory_space<vmem>>, vector<1x32xf32>
    %29 = vector.broadcast %28 : vector<1x32xf32> to vector<8x32xf32>
    %30 = arith.addf %27, %29 : vector<8x32xf32>
    %c0_18 = arith.constant 0 : index
    %c0_19 = arith.constant 0 : index
    %31 = vector.load %arg7[%c0_18, %c0_19] : memref<8x32xf32, #tpu.memory_space<vmem>>, vector<8x32xf32>
    tpu.vector_store %arg7[%c0_18, %c0_19], %30 {strides = array<i32>} : memref<8x32xf32, #tpu.memory_space<vmem>>, vector<8x32xf32>,
    return
  }
  func.func @transform_0(%arg0: i32, %arg1: i32) -> (i32, i32) {
    %c0_i32 = arith.constant 0 : i32
    %c0_i32_0 = arith.constant 0 : i32
    return %arg0, %c0_i32 : i32, i32
  }
  func.func @transform_1(%arg0: i32, %arg1: i32) -> (i32, i32) {
    %c0_i32 = arith.constant 0 : i32
    %c0_i32_0 = arith.constant 0 : i32
    return %c0_i32, %arg1 : i32, i32
  }
  func.func @transform_2(%arg0: i32, %arg1: i32) -> (i32, i32) {
    %c0_i32 = arith.constant 0 : i32
    %c0_i32_0 = arith.constant 0 : i32
    return %c0_i32, %arg1 : i32, i32
  }
  func.func @transform_3(%arg0: i32, %arg1: i32) -> (i32, i32) {
    %c0_i32 = arith.constant 0 : i32
    %c0_i32_0 = arith.constant 0 : i32
    %c0_i32_1 = arith.constant 0 : i32
    return %c0_i32, %c0_i32_0 : i32, i32
  }
  func.func @transform_4(%arg0: i32, %arg1: i32) -> (i32, i32) {
    %c0_i32 = arith.constant 0 : i32
    %c0_i32_0 = arith.constant 0 : i32
    %c0_i32_1 = arith.constant 0 : i32
    return %c0_i32, %c0_i32_0 : i32, i32
  }
  func.func @transform_5(%arg0: i32, %arg1: i32) -> (i32, i32) {
    %c0_i32 = arith.constant 0 : i32
    return %arg0, %arg1 : i32, i32
  }
}

</mosaic_0001>

<llo_original>
// kernel: tpu_custom_call.1
$region0: #{tpu_custom_call.1}
  #allocation0 [shape = 'u32[]', space=smem, size = 0x4, offset = 0x4, fixed_abs, tag = 'smem constant byte address 0x4 - core index']
  #allocation1 [shape = 'u32[144,128]{1,0:T(1,128)}', space=vmem, size = 0x12000, scoped, tag = 'internal scratch']
  #allocation2 [shape = 'bf16[8,32]{1,0:T(8,128)(2,1)}', space=vmem, size = 0x800, scoped, tag = 'scratch operand']
  %s0 = inlined_call_operand.hbm [shape: f32[16,32], index: 0, kind: input, shape index: {}]
  %s1 = inlined_call_operand.hbm [shape: bf16[32,32], index: 1, kind: input, shape index: {}]
  %s2 = inlined_call_operand.vmem [shape: f32[1,32], index: 2, kind: input, shape index: {}]
  %s3 = inlined_call_operand.vmem [shape: f32[1,32], index: 3, kind: input, shape index: {}]
  %s4 = inlined_call_operand.vmem [shape: f32[1,32], index: 4, kind: input, shape index: {}]
  %s5 = inlined_call_operand.hbm [shape: f32[16,32], index: 5, kind: output, shape index: {}]
  %s6 = sld [smem:[#allocation0]]
  $region61: #{tpu_custom_call.1} parent=0
    _
  %s8 = ssub.s32 1, %s6
  %s9 = scalar_select 0, %s8, %s6
  $region1: #{tpu_custom_call.1} parent=0
    #allocation3 [shape = 'u8[8192]{0}', space=vmem, size = 0x2000, scoped, tag = 'input window, operand 0']
    #allocation4 [shape = 's32[2]{0}', space=sflag, size = 0x8, scoped, tag = 'scoped memory for tpu_custom_call.1']
    #allocation5 [shape = 's32[2]{0}', space=sflag, size = 0x8, scoped, tag = 'scoped memory for tpu_custom_call.1']
    #allocation6 [shape = 'u8[8192]{0}', space=vmem, size = 0x2000, scoped, tag = 'input window, operand 1, single buffered']
    #allocation7 [shape = 's32[1]{0}', space=sflag, size = 0x4, scoped, tag = 'scoped memory for tpu_custom_call.1']
    #allocation8 [shape = 'u8[8192]{0}', space=vmem, size = 0x2000, scoped, tag = 'output window, operand 0']
    %10 = vsyncpa [#allocation4], 0
    %s11 = scalar_lea.sflag [#allocation4], 1
    %12 = vsyncpa %s11, 0
    %13 = vsyncpa [#allocation7], 0
    %14 = vsyncpa [#allocation5], 0
    %s15 = scalar_lea.sflag [#allocation5], 1
    %16 = vsyncpa %s15, 0
    loop: start=0, step=1, limit=4
    $region2: #{tpu_custom_call.1} parent=1 // loop_pre_header
      _
    $region3: #{tpu_custom_call.1} parent=1 // loop_header
      %s18 = sphi 0, %s22
      %p19 = scmp.ge.s32.totalorder %s18, 4
      %s25 = sphi 0, %s37
      %s26 = sphi 0, %s33
      %s27 = sphi 0, %s25
      %s28 = sphi 0, %s26
      %s29 = sphi 0, %s27
      %s30 = sphi 0, %s28
      %s40 = sphi 0, %s42
      %s43 = sphi 0, %s40
      %s44 = sphi 0, %s43
      %s60 = sphi 0, %s44
      %s66 = sphi 0, %s68
      %s69 = sphi 0, %s66
      %s70 = sphi 0, %s69
      %s86 = sphi 0, %s70
      %s92 = sphi 0, %s94
      %s95 = sphi 0, %s92
      %s96 = sphi 0, %s95
      %s112 = sphi 0, %s96
      %s116 = sphi 0, %s116
      %s118 = sphi 0, %s116
      %s119 = sphi 0, %s118
      %s133 = sphi 0, %s119
      %s137 = sphi 0, %s137
      %s139 = sphi 0, %s137
      %s140 = sphi 0, %s139
      %s154 = sphi 0, %s140
      %s162 = sphi 0, %s164
      %s165 = sphi 0, %s162
      %s166 = sphi 0, %s165
      %s182 = sphi 0, %s166
    $region4: #{tpu_custom_call.1} parent=1 // loop_header_branch
      %21 = sbr.rel (%p19) target = $region8
    $region5: #{tpu_custom_call.1} parent=1 // loop_body
      %s23 = ssub.s32 %s18, 1
      %s24 = ssub.s32 %s18, 2
      %s31 = sadd.s32 1, %s26
      %p32 = scmp.ge.s32.totalorder %s31, 1
      %s33 = scalar_select %p32, 0, %s31
      %s34 = sadd.s32 1, %s25
      %s35 = scalar_select %p32, %s34, %s25
      %p36 = scmp.ge.s32.totalorder %s35, 2
      %s37 = scalar_select %p36, 0, %s35
      %s38 = ssub.s32 %s25, %s37
      %p39 = scmp.eq.s32.totalorder %s38, 0
      %s41 = sadd.s32 %s40, 1
      %s42 = scalar_select %p39, %s40, %s41
      %p45 = pneg %p39
      %p46 = scmp.eq.s32.totalorder %s18, 1
      %p47 = por %p45, %p46
      %p48 = scmp.ne.s32.totalorder %s40, %s43
      %p49 = scmp.eq.s32.totalorder %s18, 0
      %p50 = por %p48, %p49
      %p51 = scmp.ne.s32.totalorder %s40, %s43
      %p52 = scmp.eq.s32.totalorder %s23, 1
      %p53 = por %p51, %p52
      %p54 = scmp.ne.s32.totalorder %s43, %s44
      %p55 = scmp.eq.s32.totalorder %s23, 0
      %p56 = por %p54, %p55
      %p57 = scmp.ne.s32.totalorder %s43, %s44
      %p58 = scmp.eq.s32.totalorder %s24, 1
      %p59 = por %p57, %p58
      %p61 = scmp.ne.s32.totalorder %s44, %s60
      %p62 = scmp.eq.s32.totalorder %s24, 0
      %p63 = por %p61, %p62
      %s64 = ssub.s32 %s26, %s33
      %p65 = scmp.eq.s32.totalorder %s64, 0
      %s67 = sadd.s32 %s66, 1
      %s68 = scalar_select %p65, %s66, %s67
      %p71 = pneg %p65
      %p72 = scmp.eq.s32.totalorder %s18, 1
      %p73 = por %p71, %p72
      %p74 = scmp.ne.s32.totalorder %s66, %s69
      %p75 = scmp.eq.s32.totalorder %s18, 0
      %p76 = por %p74, %p75
      %p77 = scmp.ne.s32.totalorder %s66, %s69
      %p78 = scmp.eq.s32.totalorder %s23, 1
      %p79 = por %p77, %p78
      %p80 = scmp.ne.s32.totalorder %s69, %s70
      %p81 = scmp.eq.s32.totalorder %s23, 0
      %p82 = por %p80, %p81
      %p83 = scmp.ne.s32.totalorder %s69, %s70
      %p84 = scmp.eq.s32.totalorder %s24, 1
      %p85 = por %p83, %p84
      %p87 = scmp.ne.s32.totalorder %s70, %s86
      %p88 = scmp.eq.s32.totalorder %s24, 0
      %p89 = por %p87, %p88
      %s90 = ssub.s32 %s26, %s33
      %p91 = scmp.eq.s32.totalorder %s90, 0
      %s93 = sadd.s32 %s92, 1
      %s94 = scalar_select %p91, %s92, %s93
      %p97 = pneg %p91
      %p98 = scmp.eq.s32.totalorder %s18, 1
      %p99 = por %p97, %p98
      %p100 = scmp.ne.s32.totalorder %s92, %s95
      %p101 = scmp.eq.s32.totalorder %s18, 0
      %p102 = por %p100, %p101
      %p103 = scmp.ne.s32.totalorder %s92, %s95
      %p104 = scmp.eq.s32.totalorder %s23, 1
      %p105 = por %p103, %p104
      %p106 = scmp.ne.s32.totalorder %s95, %s96
      %p107 = scmp.eq.s32.totalorder %s23, 0
      %p108 = por %p106, %p107
      %p109 = scmp.ne.s32.totalorder %s95, %s96
      %p110 = scmp.eq.s32.totalorder %s24, 1
      %p111 = por %p109, %p110
      %p113 = scmp.ne.s32.totalorder %s96, %s112
      %p114 = scmp.eq.s32.totalorder %s24, 0
      %p115 = por %p113, %p114
      %s117 = sadd.s32 %s116, 1
      %p120 = scmp.eq.s32.totalorder %s18, 1
      %p121 = scmp.ne.s32.totalorder %s116, %s118
      %p122 = scmp.eq.s32.totalorder %s18, 0
      %p123 = por %p121, %p122
      %p124 = scmp.ne.s32.totalorder %s116, %s118
      %p125 = scmp.eq.s32.totalorder %s23, 1
      %p126 = por %p124, %p125
      %p127 = scmp.ne.s32.totalorder %s118, %s119
      %p128 = scmp.eq.s32.totalorder %s23, 0
      %p129 = por %p127, %p128
      %p130 = scmp.ne.s32.totalorder %s118, %s119
      %p131 = scmp.eq.s32.totalorder %s24, 1
      %p132 = por %p130, %p131
      %p134 = scmp.ne.s32.totalorder %s119, %s133
      %p135 = scmp.eq.s32.totalorder %s24, 0
      %p136 = por %p134, %p135
      %s138 = sadd.s32 %s137, 1
      %p141 = scmp.eq.s32.totalorder %s18, 1
      %p142 = scmp.ne.s32.totalorder %s137, %s139
      %p143 = scmp.eq.s32.totalorder %s18, 0
      %p144 = por %p142, %p143
      %p145 = scmp.ne.s32.totalorder %s137, %s139
      %p146 = scmp.eq.s32.totalorder %s23, 1
      %p147 = por %p145, %p146
      %p148 = scmp.ne.s32.totalorder %s139, %s140
      %p149 = scmp.eq.s32.totalorder %s23, 0
      %p150 = por %p148, %p149
      %p151 = scmp.ne.s32.totalorder %s139, %s140
      %p152 = scmp.eq.s32.totalorder %s24, 1
      %p153 = por %p151, %p152
      %p155 = scmp.ne.s32.totalorder %s140, %s154
      %p156 = scmp.eq.s32.totalorder %s24, 0
      %p157 = por %p155, %p156
      %s158 = ssub.s32 %s25, %s37
      %s159 = ssub.s32 %s26, %s33
      %s160 = sor.u32 %s158, %s159
      %p161 = scmp.eq.s32.totalorder %s160, 0
      %s163 = sadd.s32 %s162, 1
      %s164 = scalar_select %p161, %s162, %s163
      %p167 = pneg %p161
      %p168 = scmp.eq.s32.totalorder %s18, 1
      %p169 = por %p167, %p168
      %p170 = scmp.ne.s32.totalorder %s162, %s165
      %p171 = scmp.eq.s32.totalorder %s18, 0
      %p172 = por %p170, %p171
      %p173 = scmp.ne.s32.totalorder %s162, %s165
      %p174 = scmp.eq.s32.totalorder %s23, 1
      %p175 = por %p173, %p174
      %p176 = scmp.ne.s32.totalorder %s165, %s166
      %p177 = scmp.eq.s32.totalorder %s23, 0
      %p178 = por %p176, %p177
      %p179 = scmp.ne.s32.totalorder %s165, %s166
      %p180 = scmp.eq.s32.totalorder %s24, 1
      %p181 = por %p179, %p180
      %p183 = scmp.ne.s32.totalorder %s166, %s182
      %p184 = scmp.eq.s32.totalorder %s24, 0
      %p185 = por %p183, %p184
      %p186 = scmp.le.s32.totalorder 1, %s18
      %p187 = scmp.lt.s32.totalorder %s18, 3
      %p188 = pnand %p186, %p187
      %p189 = pneg %p188
      // Predicated region
      $region9: #{tpu_custom_call.1} parent=5 // pred_check
        _
      $region10: #{tpu_custom_call.1} parent=5 // pred_check_branch
        %191 = sbr.rel (%p188) target = $region12
      $region11: #{tpu_custom_call.1} parent=5 // pred_region
        %s192 = ssub.s32 %s18, 1
        // Predicated region
        $region13: #{tpu_custom_call.1} parent=11 // pred_check
          %p193 = pneg %p82
        $region14: #{tpu_custom_call.1} parent=11 // pred_check_branch
          %195 = sbr.rel (%p193) target = $region16
        $region15: #{tpu_custom_call.1} parent=11 // pred_region
          %s197 = ssub.s32 256, 256
          %198 = vsyncadd [#allocation7], %s197
          %s199 = smul.addr %s28, 64
          %s200 = scalar_lea.hbm %s1, %s199
          %s201 = sshll.u32 [#allocation6], 4
          %s202 = int_to_ptr.vmem [resolvable:$true] %s201
          %207 = dma.hbm_to_vmem [thread:$0]  %s200, 256, %s202, [#allocation7], 64, 64, 4
        $region16: #{tpu_custom_call.1} parent=11 // pred_fallthru
          _
        // Predicated region
        $region17: #{tpu_custom_call.1} parent=11 // pred_check
          %p208 = pneg %p108
        $region18: #{tpu_custom_call.1} parent=11 // pred_check_branch
          %210 = sbr.rel (%p208) target = $region20
        $region19: #{tpu_custom_call.1} parent=11 // pred_region
          %p211 = scmp.lt.s32.totalorder %s28, 0
          %s212 = scalar_select %p211, %s28, 0
          %s213 = scalar_lea.vmem %s2, %s212
        $region20: #{tpu_custom_call.1} parent=11 // pred_fallthru
          _
        // Predicated region
        $region21: #{tpu_custom_call.1} parent=11 // pred_check
          %p214 = pneg %p129
        $region22: #{tpu_custom_call.1} parent=11 // pred_check_branch
          %216 = sbr.rel (%p214) target = $region24
        $region23: #{tpu_custom_call.1} parent=11 // pred_region
          _
        $region24: #{tpu_custom_call.1} parent=11 // pred_fallthru
          _
        // Predicated region
        $region25: #{tpu_custom_call.1} parent=11 // pred_check
          %p217 = pneg %p150
        $region26: #{tpu_custom_call.1} parent=11 // pred_check_branch
          %219 = sbr.rel (%p217) target = $region28
        $region27: #{tpu_custom_call.1} parent=11 // pred_region
          _
        $region28: #{tpu_custom_call.1} parent=11 // pred_fallthru
          _
      $region12: #{tpu_custom_call.1} parent=5 // pred_fallthru
        _
      %p220 = scmp.lt.s32.totalorder %s18, 2
      // Predicated region
      $region29: #{tpu_custom_call.1} parent=5 // pred_check
        %p221 = pneg %p220
      $region30: #{tpu_custom_call.1} parent=5 // pred_check_branch
        %223 = sbr.rel (%p221) target = $region32
      $region31: #{tpu_custom_call.1} parent=5 // pred_region
        // Predicated region
        $region33: #{tpu_custom_call.1} parent=31 // pred_check
          %p224 = pneg %p50
        $region34: #{tpu_custom_call.1} parent=31 // pred_check_branch
          %226 = sbr.rel (%p224) target = $region36
        $region35: #{tpu_custom_call.1} parent=31 // pred_region
          %s227 = sand.u32 %s40, 1
          %s228 = scalar_lea.sflag [#allocation4], %s227
          %s229 = sand.u32 %s40, 1
          %s230 = smul.addr %s229, 8
          %s231 = scalar_lea.vmem [#allocation3], %s230
          %s233 = ssub.s32 128, 128
          %234 = vsyncadd %s228, %s233
          %s235 = smul.addr %s25, 128
          %s236 = scalar_lea.hbm %s0, %s235
          %s238 = sshll.u32 %s231, 4
          %s239 = int_to_ptr.vmem [resolvable:$true] %s238
          %241 = dma.hbm_to_vmem [thread:$0]  %s236, 128, %s239, %s228
        $region36: #{tpu_custom_call.1} parent=31 // pred_fallthru
          _
      $region32: #{tpu_custom_call.1} parent=5 // pred_fallthru
        _
      %p242 = scmp.le.s32.totalorder 1, %s18
      %p243 = scmp.lt.s32.totalorder %s18, 3
      %p244 = pnand %p242, %p243
      %p245 = pneg %p244
      // Predicated region
      $region37: #{tpu_custom_call.1} parent=5 // pred_check
        _
      $region38: #{tpu_custom_call.1} parent=5 // pred_check_branch
        %247 = sbr.rel (%p244) target = $region40
      $region39: #{tpu_custom_call.1} parent=5 // pred_region
        %s248 = ssub.s32 %s18, 1
        %s249 = sand.u32 %s43, 1
        %s250 = scalar_lea.sflag [#allocation4], %s249
        %s251 = sand.u32 %s43, 1
        %s252 = smul.addr %s251, 8
        %s253 = scalar_lea.vmem [#allocation3], %s252
        // Predicated region
        $region41: #{tpu_custom_call.1} parent=39 // pred_check
          %p254 = pneg %p56
        $region42: #{tpu_custom_call.1} parent=39 // pred_check_branch
          %256 = sbr.rel (%p254) target = $region44
        $region43: #{tpu_custom_call.1} parent=39 // pred_region
          %257 = dma.done %s250, 128
        $region44: #{tpu_custom_call.1} parent=39 // pred_fallthru
          _
        // Predicated region
        $region45: #{tpu_custom_call.1} parent=39 // pred_check
          %p258 = pneg %p82
        $region46: #{tpu_custom_call.1} parent=39 // pred_check_branch
          %260 = sbr.rel (%p258) target = $region48
        $region47: #{tpu_custom_call.1} parent=39 // pred_region
          %261 = dma.done [#allocation7], 256
        $region48: #{tpu_custom_call.1} parent=39 // pred_fallthru
          _
        %s262 = sand.u32 %s43, 1
        %s263 = scalar_lea.sflag [#allocation4], %s262
        %s264 = sand.u32 %s43, 1
        %s265 = smul.addr %s264, 8
        %s266 = scalar_lea.vmem [#allocation3], %s265
        %p267 = pneg %p56
        %p268 = pneg %p53
        %p269 = pneg %p82
        %p270 = pneg %p79
        %p271 = scmp.lt.s32.totalorder %s28, 0
        %s272 = scalar_select %p271, %s28, 0
        %s273 = scalar_lea.vmem %s2, %s272
        %p274 = pneg %p108
        %p275 = pneg %p105
        %p276 = pneg %p129
        %p277 = pneg %p126
        %p278 = pneg %p150
        %p279 = pneg %p147
        %p280 = pneg %p178
        %p281 = pneg %p175
        %s282 = sand.u32 %s165, 1
        %s283 = scalar_lea.sflag [#allocation5], %s282
        %s284 = sand.u32 %s165, 1
        %s285 = smul.addr %s284, 8
        %s286 = scalar_lea.vmem [#allocation8], %s285
        %p287 = scmp.lt.s32.totalorder %s28, 0
        %s288 = scalar_select %p287, %s28, 0
        %s289 = scalar_lea.vmem %s2, %s288
        %v291 = vld [vmem:[%s253] sm:$0xff]
        %vm292 = vcmask 261120
        %v293 = vsel %vm292, %v291, 0.0
        %294 = vadd.xlane.f32.xlu0 %v293
        %v295 = vpop.xlane.xlu0 %294
        %v296 = vrcp.pop 32.0
        %v297 = vmul.f32 %v295, %v296
        %v298 = vsub.f32 %v291, %v297
        %v299 = vmul.f32 %v298, %v298
        %v300 = vsel %vm292, %v299, 0.0
        %301 = vadd.xlane.f32.xlu0 %v300
        %v302 = vpop.xlane.xlu0 %301
        %v303 = vmul.f32 %v302, %v296
        %v304 = vadd.f32 %v303, 1e-05
        %v305 = vrsqrt.pop %v304
        %v306 = vmul.f32 %v298, %v305
        %v307 = vld [vmem:[%s3] sm:$0x1]
        %v309 = vlaneseq
        %v310 = vshrl.u32 %v309, 7
        %v311 = vsub.s32 0, %v310
        %v312 = vrot.slane %v307, %v311
        %v314 = vmul.f32 %v306, %v312
        %v315 = vld [vmem:[%s4] sm:$0x1]
        %v317 = vlaneseq
        %v318 = vshrl.u32 %v317, 7
        %v319 = vsub.s32 0, %v318
        %v320 = vrot.slane %v315, %v319
        %v322 = vadd.f32 %v314, %v320
        %v323 = vpack.c.bf16 %v322, %v322
        %vm324 = vcmask 257024
        %325 = vst.msk [vmem:[#allocation2] sm:$0xf] %vm324, %v323
        %v326 = vld [vmem:[#allocation2] sm:$0xf]
        %v327 = vld [vmem:[#allocation6] sm:$0xf]
        %v328 = vld [vmem:[#allocation6 + $0x4] sm:$0xf]
        %v329 = vld [vmem:[#allocation6 + $0x8] sm:$0xf]
        %v330 = vld [vmem:[#allocation6 + $0xc] sm:$0xf]
        %v331 = vld [vmem:[%s289] sm:$0x1]
        %v333 = vlaneseq
        %v334 = vshrl.u32 %v333, 7
        %v335 = vsub.s32 0, %v334
        %v336 = vrot.slane %v331, %v335
        %v342 = vunpack.c.l.b16 %v327
        %v343 = vunpack.c.l.b16 %v328
        %v344 = vunpack.c.l.b16 %v329
        %v345 = vunpack.c.l.b16 %v330
        %v346 = vpack.c.b16 %v343, %v342
        %v347 = vpack.c.b16 %v345, %v344
        %v351 = vsel %vm292, %v326, 0
        %353 = vmatprep.subr.bf16.mxu0 0
        %354 = vmatpush1.bf16.msra.mxu0 %v346
        %355 = vmatprep.subr.bf16.mxu0 0
        %356 = vmatpush1.bf16.msra.mxu0 %v347
        %357 = vmatprep.subr.bf16.mxu0 0
        %358 = vmatpush1.bf16.msra.mxu0 0
        %359 = vmatprep.subr.bf16.mxu0 0
        %360 = vmatpush1.bf16.msra.mxu0 0
        %361 = vmatprep.subr.bf16.mxu0 0
        %362 = vmatpush1.bf16.msra.mxu0 0
        %363 = vmatprep.subr.bf16.mxu0 0
        %364 = vmatpush1.bf16.msra.mxu0 0
        %365 = vmatprep.subr.bf16.mxu0 0
        %366 = vmatpush1.bf16.msra.mxu0 0
        %367 = vmatprep.subr.bf16.mxu0 0
        %368 = vmatpush1.bf16.msra.mxu0 0
        %369 = vmatprep.subr.bf16.mxu0 0
        %370 = vmatpush1.bf16.msra.mxu0 0
        %371 = vmatprep.subr.bf16.mxu0 0
        %372 = vmatpush1.bf16.msra.mxu0 0
        %373 = vmatprep.subr.bf16.mxu0 0
        %374 = vmatpush1.bf16.msra.mxu0 0
        %375 = vmatprep.subr.bf16.mxu0 0
        %376 = vmatpush1.bf16.msra.mxu0 0
        %377 = vmatprep.subr.bf16.mxu0 0
        %378 = vmatpush1.bf16.msra.mxu0 0
        %379 = vmatprep.subr.bf16.mxu0 0
        %380 = vmatpush1.bf16.msra.mxu0 0
        %381 = vmatprep.subr.bf16.mxu0 0
        %382 = vmatpush1.bf16.msra.mxu0 0
        %383 = vmatprep.subr.bf16.mxu0 0
        %384 = vmatpush1.bf16.msra.mxu0 0
        %385 = vmatprep.mubr.bf16.mxu0 0
        %386 = vmatmul.mubr.bf16.gmra.mrb[0].mxu0 %v351
        %v387 = vpop.f32.mrb[0].mxu0
        %v388 = vadd.f32 %v336, %v387
        %v389 = vpop.f32.mrb[0].mxu0
        %v390 = vpop.f32.mrb[0].mxu0
        %v391 = vpop.f32.mrb[0].mxu0
        %392 = vdwg.mxu0
        %393 = vst.msk [vmem:[%s286] sm:$0xff] %vm292, %v388
        %s394 = sand.u32 %s165, 1
        %s395 = scalar_lea.sflag [#allocation5], %s394
        %s396 = sand.u32 %s165, 1
        %s397 = smul.addr %s396, 8
        %s398 = scalar_lea.vmem [#allocation8], %s397
        // Predicated region
        $region49: #{tpu_custom_call.1} parent=39 // pred_check
          %p399 = pneg %p175
        $region50: #{tpu_custom_call.1} parent=39 // pred_check_branch
          %401 = sbr.rel (%p399) target = $region52
        $region51: #{tpu_custom_call.1} parent=39 // pred_region
          %s403 = ssub.s32 128, 128
          %404 = vsyncadd %s395, %s403
          %s405 = sadd.s32 %s28, %s27
          %s406 = smul.addr %s405, 128
          %s407 = scalar_lea.hbm %s5, %s406
          %s409 = sshll.u32 %s398, 4
          %s410 = int_to_ptr.vmem [resolvable:$true] %s409
          %412 = dma.vmem_to_hbm [thread:$0]  %s410, 128, %s407, %s395
        $region52: #{tpu_custom_call.1} parent=39 // pred_fallthru
          _
      $region40: #{tpu_custom_call.1} parent=5 // pred_fallthru
        _
      %p413 = scmp.le.s32.totalorder 2, %s18
      // Predicated region
      $region53: #{tpu_custom_call.1} parent=5 // pred_check
        %p414 = pneg %p413
      $region54: #{tpu_custom_call.1} parent=5 // pred_check_branch
        %416 = sbr.rel (%p414) target = $region56
      $region55: #{tpu_custom_call.1} parent=5 // pred_region
        %s417 = ssub.s32 %s18, 2
        // Predicated region
        $region57: #{tpu_custom_call.1} parent=55 // pred_check
          %p418 = pneg %p181
        $region58: #{tpu_custom_call.1} parent=55 // pred_check_branch
          %420 = sbr.rel (%p418) target = $region60
        $region59: #{tpu_custom_call.1} parent=55 // pred_region
          %s421 = sand.u32 %s166, 1
          %s422 = scalar_lea.sflag [#allocation5], %s421
          %s423 = sand.u32 %s166, 1
          %s424 = smul.addr %s423, 8
          %s425 = scalar_lea.vmem [#allocation8], %s424
          %426 = dma.done %s422, 128
        $region60: #{tpu_custom_call.1} parent=55 // pred_fallthru
          _
      $region56: #{tpu_custom_call.1} parent=5 // pred_fallthru
        _
    $region6: #{tpu_custom_call.1} parent=1 // loop_footer
      %s22 = sadd.s32 1, %s18
    $region7: #{tpu_custom_call.1} parent=1 // loop_footer_branch
      %17 = sbr.rel target = $region3
    $region8: #{tpu_custom_call.1} parent=1 // loop_exit
      _
    %427 = vsyncpa [#allocation4], 1
    %s428 = scalar_lea.sflag [#allocation4], 1
    %429 = vsyncpa %s428, 1
    %430 = vsyncpa [#allocation7], 1
    %431 = vsyncpa [#allocation5], 1
    %s432 = scalar_lea.sflag [#allocation5], 1
    %433 = vsyncpa %s432, 1

</llo_original>
